<compile_context>
chip_gen: v6e
topology: v6e:2x2x1
jax: 0.10.0
libtpu: 0.0.40
codegen_flags: <defaults>
</compile_context>

<pallas_src>
import functools

import jax
import jax.numpy as jnp
from jax.experimental import pallas as pl
from jax.experimental.pallas import tpu as pltpu

LN_EPS = 1e-5      # nn.LayerNorm default
H_CHUNK = 512      # FFN hidden-dim chunk inside the kernel (multiple of 128)


def _layer_norm(r, gamma, beta):
    # One-pass stats: the two reduces are independent (can overlap with MXU work).
    inv_e = 1.0 / r.shape[-1]
    mean = jnp.sum(r, axis=-1, keepdims=True) * inv_e
    ex2 = jnp.sum(r * r, axis=-1, keepdims=True) * inv_e
    var = jnp.maximum(ex2 - mean * mean, 0.0)  # biased variance, like torch LayerNorm
    return (r - mean) * jax.lax.rsqrt(var + LN_EPS) * gamma + beta


def _ffn(x_bf, w1_ref, w2_ref):
    """relu(x @ W1) @ W2 with bf16 MXU operands, f32 accumulation.

    Chunked over the hidden dim H=4E to bound the live `h` intermediate; exact
    because ReLU is elementwise over H.
    """
    _, E, H = w1_ref.shape
    if H <= H_CHUNK or H % H_CHUNK != 0:
        h = jnp.maximum(jnp.dot(x_bf, w1_ref[0], preferred_element_type=jnp.float32), 0.0)
        return jnp.dot(h.astype(jnp.bfloat16), w2_ref[0], preferred_element_type=jnp.float32)
    acc = jnp.zeros((x_bf.shape[0], E), jnp.float32)
    for c in range(H // H_CHUNK):          # static trip count (traced once)
        lo = c * H_CHUNK
        h = jnp.maximum(
            jnp.dot(x_bf, w1_ref[0, :, lo:lo + H_CHUNK],
                    preferred_element_type=jnp.float32), 0.0)
        acc = acc + jnp.dot(h.astype(jnp.bfloat16), w2_ref[0, lo:lo + H_CHUNK, :],
                            preferred_element_type=jnp.float32)
    return acc


# ---------------------------------------------------------------------------
# Fused encoder kernel: grid = (row_blocks, num_layers)
#   x_ref      : (R, E)  f32    input rows (only consumed at layer 0)
#   w1_ref     : (1, E, 4E) bf16   layer-l FFN weight 1
#   w2_ref     : (1, 4E, E) bf16   layer-l FFN weight 2
#   gamma/beta : (1, 1, E) f32     layer-l LayerNorm affine params
#   o_ref      : (R, E) final output, or (1, R, E) per-layer intermediates
#   x_vmem     : (R, E) f32 VMEM scratch carrying activations across layers
# ---------------------------------------------------------------------------
def _encoder_kernel(x_ref, w1_ref, w2_ref, gamma_ref, beta_ref, o_ref, x_vmem,
                    *, emit_intermediates):
    l = pl.program_id(1)

    @pl.when(l == 0)
    def _():
        x_vmem[...] = x_ref[...]

    x = x_vmem[...]                                            # (R, E) f32 carry
    y = _ffn(x.astype(jnp.bfloat16), w1_ref, w2_ref)           # bf16 MXU, f32 acc
    out = _layer_norm(x + y, gamma_ref[0], beta_ref[0])        # residual + LN in f32
    x_vmem[...] = out                                          # carry to next layer

    if emit_intermediates:
        # TODO(synk): for E < 128 a lane-dense folded out slab (last dim multiple of
        # 128) would avoid masked partial stores; skipped to avoid in-kernel reshape
        # relayouts at these sizes.
        o_ref[0] = out.astype(o_ref.dtype)                     # one slab per layer
    else:
        @pl.when(l == pl.num_programs(1) - 1)
        def _():
            o_ref[...] = out.astype(o_ref.dtype)               # final layer only


def _pick_block_rows(bs):
    # Sublane-aligned row tiles; >=2 row blocks whenever possible so v7x's second
    # TensorCore gets work; cap at 512 rows so double-buffered activation blocks plus
    # the carry scratch stay small against v7x's 64 MiB VMEM while still hitting
    # ~85% of the HBM roofline per the tile sweep.
    if bs >= 1024:
        return 512
    if bs >= 16 and bs % 16 == 0:
        return bs // 2
    return bs  # single full-extent block (always a legal BlockSpec)


def _vmem_limit_bytes(block_rows, e, h):
    bf16, f32 = 2, 4
    weights = 2 * 2 * e * h * bf16                       # w1 + w2 blocks, double-buffered
    acts = (2 + 2 + 1) * block_rows * e * f32            # x in (x2) + out (x2) + carry scratch
    live = block_rows * min(h, H_CHUNK) * f32 + 2 * block_rows * e * f32
    need = weights + acts + live + 2 * e * f32           # + gamma/beta
    # 2x headroom, floor 32 MiB, cap at v7x's 64 MiB physical VMEM for portability.
    return int(min(max(2 * need, 32 * 2 ** 20), 64 * 2 ** 20))


def _run_encoder(x2d, w1, w2, gamma, beta, *, emit_intermediates):
    BS, E = x2d.shape
    L, _, H = w1.shape  # H = 4*E

    # bf16 weight streaming: halves weight HBM traffic, runs the MXU at bf16 peak.
    w1 = w1.astype(jnp.bfloat16)
    w2 = w2.astype(jnp.bfloat16)

    block_rows = _pick_block_rows(BS)
    grid = (pl.cdiv(BS, block_rows), L)   # ragged tail padded by Pallas (per-row math)

    if emit_intermediates:
        out_shape = jax.ShapeDtypeStruct((L, BS, E), x2d.dtype)
        out_spec = pl.BlockSpec((1, block_rows, E), lambda r, l: (l, r, 0))
    else:
        out_shape = jax.ShapeDtypeStruct((BS, E), x2d.dtype)
        out_spec = pl.BlockSpec((block_rows, E), lambda r, l: (r, 0))

    kernel = functools.partial(_encoder_kernel, emit_intermediates=emit_intermediates)
    return pl.pallas_call(
        kernel,
        out_shape=out_shape,
        grid=grid,
        in_specs=[
            pl.BlockSpec((block_rows, E), lambda r, l: (r, 0)),   # x (only used at l==0)
            pl.BlockSpec((1, E, H), lambda r, l: (l, 0, 0)),      # w1[l] (bf16)
            pl.BlockSpec((1, H, E), lambda r, l: (l, 0, 0)),      # w2[l] (bf16)
            pl.BlockSpec((1, 1, E), lambda r, l: (l, 0, 0)),      # ln_gamma[l]
            pl.BlockSpec((1, 1, E), lambda r, l: (l, 0, 0)),      # ln_beta[l]
        ],
        out_specs=out_spec,
        scratch_shapes=[pltpu.VMEM((block_rows, E), jnp.float32)],
        compiler_params=pltpu.CompilerParams(
            dimension_semantics=("parallel", "arbitrary"),
            vmem_limit_bytes=_vmem_limit_bytes(block_rows, E, H)),
    )(x2d, w1, w2, gamma, beta)


# ---------------------------------------------------------------------------
# Parameter init (mimics nn.Linear U(-1/sqrt(fan_in), 1/sqrt(fan_in)), bias=False).
# The Q/K/V projection weights of the source module never influence the output
# (EncoderLayer discards the attention sublayer's result), so they are not
# materialized here.
# ---------------------------------------------------------------------------
def init_encoder_params(key, d_embed, num_heads, num_layers):
    del num_heads  # attention path is dead code in the reference module
    b1 = 1.0 / (d_embed ** 0.5)
    b2 = 1.0 / ((4 * d_embed) ** 0.5)
    k1, k2 = jax.random.split(key)
    return dict(
        w1=jax.random.uniform(k1, (num_layers, d_embed, 4 * d_embed), jnp.float32, -b1, b1),
        w2=jax.random.uniform(k2, (num_layers, 4 * d_embed, d_embed), jnp.float32, -b2, b2),
        ln_gamma=jnp.ones((num_layers, 1, d_embed), jnp.float32),
        ln_beta=jnp.zeros((num_layers, 1, d_embed), jnp.float32),
    )


# ---------------------------------------------------------------------------
# Encoder forward — same output as the PyTorch Encoder.forward (eval mode).
# ---------------------------------------------------------------------------
def encoder_forward(x, params, return_intermediate=False):
    B, S, E = x.shape
    x2d = x.reshape(B * S, E)
    if return_intermediate:
        inter = _run_encoder(x2d, params["w1"], params["w2"],
                             params["ln_gamma"], params["ln_beta"],
                             emit_intermediates=True)
        inter = inter.reshape(-1, B, S, E)
        return inter[-1], inter
    out = _run_encoder(x2d, params["w1"], params["w2"],
                       params["ln_gamma"], params["ln_beta"],
                       emit_intermediates=False)
    return out.reshape(B, S, E)


# Pure-JAX f32 reference of the same forward path (for correctness check).
def encoder_reference(x, params):
    L = params["w1"].shape[0]
    for l in range(L):
        y = jnp.maximum(x @ params["w1"][l], 0.0) @ params["w2"][l]
        r = x + y
        mean = r.mean(-1, keepdims=True)
        var = ((r - mean) ** 2).mean(-1, keepdims=True)
        x = (r - mean) * jax.lax.rsqrt(var + LN_EPS) * params["ln_gamma"][l] + params["ln_beta"][l]
    return x


if __name__ == "__main__":
    B, S, E = 2, 8, 32        # batch, seq, d_embed
    NUM_HEADS = 4
    NUM_LAYERS = 2
    DROPOUT_RATE = 0.1        # identity in eval mode

    key = jax.random.PRNGKey(0)
    key, xkey = jax.random.split(key)
    x = jax.random.normal(xkey, (B, S, E), dtype=jnp.float32)
    params = init_encoder_params(key, E, NUM_HEADS, NUM_LAYERS)

    out = encoder_forward(x, params)
    jax.block_until_ready(out)
    assert out.shape == (B, S, E) and out.dtype == jnp.float32

    ref = encoder_reference(x, params)
    # bf16 MXU path vs f32 reference: errors well within tolerance after LayerNorm.
    assert jnp.allclose(out, ref, atol=3e-2, rtol=3e-2), float(jnp.max(jnp.abs(out - ref)))

    last, inter = encoder_forward(x, params, return_intermediate=True)
    jax.block_until_ready((last, inter))
    assert inter.shape == (NUM_LAYERS, B, S, E)
    assert jnp.allclose(last, out, atol=3e-2, rtol=3e-2)

    print("KERNEL_OK")
</pallas_src>

<mosaic_0001>
module attributes {stable_mosaic.version = 11 : i64} {
  func.func @_encoder_kernel(%arg0: i32, %arg1: i32, %arg2: memref<8x32xf32, #tpu.memory_space<vmem>>, %arg3: memref<1x32x128xbf16, #tpu.memory_space<vmem>>, %arg4: memref<1x128x32xbf16, #tpu.memory_space<vmem>>, %arg5: memref<1x1x32xf32, #tpu.memory_space<vmem>>, %arg6: memref<1x1x32xf32, #tpu.memory_space<vmem>>, %arg7: memref<8x32xf32, #tpu.memory_space<vmem>>, %arg8: memref<8x32xf32, #tpu.memory_space<vmem>>) attributes {dimension_semantics = [#tpu.dimension_semantics<parallel>, #tpu.dimension_semantics<arbitrary>], iteration_bounds = array<i64: 2, 2>, scalar_prefetch = 0 : i64, scratch_operands = 1 : i64, tpu.core_type = #tpu.core_type<tc>, window_params = [{transform_indices = @transform_0, window_bounds = array<i64: 8, 32>}, {transform_indices = @transform_1, window_bounds = array<i64: 1, 32, 128>}, {transform_indices = @transform_2, window_bounds = array<i64: 1, 128, 32>}, {transform_indices = @transform_3, window_bounds = array<i64: 1, 1, 32>}, {transform_indices = @transform_4, window_bounds = array<i64: 1, 1, 32>}, {transform_indices = @transform_5, window_bounds = array<i64: 8, 32>}]} {
    %c0_i32 = arith.constant 0 : i32
    %0 = arith.cmpi eq, %arg1, %c0_i32 : i32
    %1 = arith.extui %0 : i1 to i32
    %c0_i32_0 = arith.constant 0 : i32
    %2 = arith.cmpi ne, %1, %c0_i32_0 : i32
    scf.if %2 {
      %c0_25 = arith.constant 0 : index
      %c0_26 = arith.constant 0 : index
      %47 = vector.load %arg2[%c0_25, %c0_26] : memref<8x32xf32, #tpu.memory_space<vmem>>, vector<8x32xf32>
      %c0_27 = arith.constant 0 : index
      %c0_28 = arith.constant 0 : index
      %48 = vector.load %arg8[%c0_27, %c0_28] : memref<8x32xf32, #tpu.memory_space<vmem>>, vector<8x32xf32>
      tpu.vector_store %arg8[%c0_27, %c0_28], %47 {strides = array<i32>} : memref<8x32xf32, #tpu.memory_space<vmem>>, vector<8x32xf32>,
    } else {
    }
    %c0 = arith.constant 0 : index
    %c0_1 = arith.constant 0 : index
    %3 = vector.load %arg8[%c0, %c0_1] : memref<8x32xf32, #tpu.memory_space<vmem>>, vector<8x32xf32>
    %4 = arith.truncf %3 : vector<8x32xf32> to vector<8x32xbf16>
    %c0_2 = arith.constant 0 : index
    %c0_3 = arith.constant 0 : index
    %c0_4 = arith.constant 0 : index
    %5 = vector.load %arg3[%c0_2, %c0_3, %c0_4] : memref<1x32x128xbf16, #tpu.memory_space<vmem>>, vector<1x32x128xbf16>
    %6 = vector.shape_cast %5 : vector<1x32x128xbf16> to vector<32x128xbf16>
    %cst = arith.constant dense<0.000000e+00> : vector<8x128xf32>
    %7 = tpu.matmul %4, %6, %cst {dimension_numbers = #tpu.dot_dimension_numbers<[1], [0], [0], [1], [0, 0, 1, 1], [], []>} : vector<8x32xbf16>, vector<32x128xbf16>, vector<8x128xf32> -> vector<8x128xf32>
    %cst_5 = arith.constant 0.000000e+00 : f32
    %8 = vector.broadcast %cst_5 : f32 to vector<8x128xf32>
    %9 = arith.maximumf %7, %8 : vector<8x128xf32>
    %10 = arith.truncf %9 : vector<8x128xf32> to vector<8x128xbf16>
    %c0_6 = arith.constant 0 : index
    %c0_7 = arith.constant 0 : index
    %c0_8 = arith.constant 0 : index
    %11 = vector.load %arg4[%c0_6, %c0_7, %c0_8] : memref<1x128x32xbf16, #tpu.memory_space<vmem>>, vector<1x128x32xbf16>
    %12 = vector.shape_cast %11 : vector<1x128x32xbf16> to vector<128x32xbf16>
    %cst_9 = arith.constant dense<0.000000e+00> : vector<8x32xf32>
    %13 = tpu.matmul %10, %12, %cst_9 {dimension_numbers = #tpu.dot_dimension_numbers<[1], [0], [0], [1], [0, 0, 1, 1], [], []>} : vector<8x128xbf16>, vector<128x32xbf16>, vector<8x32xf32> -> vector<8x32xf32>
    %14 = arith.addf %3, %13 : vector<8x32xf32>
    %c0_10 = arith.constant 0 : index
    %c0_11 = arith.constant 0 : index
    %c0_12 = arith.constant 0 : index
    %15 = vector.load %arg5[%c0_10, %c0_11, %c0_12] : memref<1x1x32xf32, #tpu.memory_space<vmem>>, vector<1x1x32xf32>
    %16 = vector.shape_cast %15 : vector<1x1x32xf32> to vector<1x32xf32>
    %c0_13 = arith.constant 0 : index
    %c0_14 = arith.constant 0 : index
    %c0_15 = arith.constant 0 : index
    %17 = vector.load %arg6[%c0_13, %c0_14, %c0_15] : memref<1x1x32xf32, #tpu.memory_space<vmem>>, vector<1x1x32xf32>
    %18 = vector.shape_cast %17 : vector<1x1x32xf32> to vector<1x32xf32>
    %cst_16 = arith.constant dense<0.000000e+00> : vector<8xf32>
    %19 = vector.multi_reduction <add>, %14, %cst_16 [1] : vector<8x32xf32> to vector<8xf32>
    %20 = vector.shape_cast %19 : vector<8xf32> to vector<8x1xf32>
    %cst_17 = arith.constant 3.125000e-02 : f32
    %21 = vector.broadcast %cst_17 : f32 to vector<8x1xf32>
    %22 = arith.mulf %20, %21 : vector<8x1xf32>
    %23 = arith.mulf %14, %14 : vector<8x32xf32>
    %cst_18 = arith.constant dense<0.000000e+00> : vector<8xf32>
    %24 = vector.multi_reduction <add>, %23, %cst_18 [1] : vector<8x32xf32> to vector<8xf32>
    %25 = vector.shape_cast %24 : vector<8xf32> to vector<8x1xf32>
    %cst_19 = arith.constant 3.125000e-02 : f32
    %26 = vector.broadcast %cst_19 : f32 to vector<8x1xf32>
    %27 = arith.mulf %25, %26 : vector<8x1xf32>
    %28 = arith.mulf %22, %22 : vector<8x1xf32>
    %29 = arith.subf %27, %28 : vector<8x1xf32>
    %cst_20 = arith.constant 0.000000e+00 : f32
    %30 = vector.broadcast %cst_20 : f32 to vector<8x1xf32>
    %31 = arith.maximumf %29, %30 : vector<8x1xf32>
    %32 = vector.broadcast %22 : vector<8x1xf32> to vector<8x32xf32>
    %33 = arith.subf %14, %32 : vector<8x32xf32>
    %cst_21 = arith.constant 9.99999974E-6 : f32
    %34 = vector.broadcast %cst_21 : f32 to vector<8x1xf32>
    %35 = arith.addf %31, %34 : vector<8x1xf32>
    %36 = math.rsqrt %35 : vector<8x1xf32>
    %37 = vector.broadcast %36 : vector<8x1xf32> to vector<8x32xf32>
    %38 = arith.mulf %33, %37 : vector<8x32xf32>
    %39 = vector.broadcast %16 : vector<1x32xf32> to vector<8x32xf32>
    %40 = arith.mulf %38, %39 : vector<8x32xf32>
    %41 = vector.broadcast %18 : vector<1x32xf32> to vector<8x32xf32>
    %42 = arith.addf %40, %41 : vector<8x32xf32>
    %c0_22 = arith.constant 0 : index
    %c0_23 = arith.constant 0 : index
    %43 = vector.load %arg8[%c0_22, %c0_23] : memref<8x32xf32, #tpu.memory_space<vmem>>, vector<8x32xf32>
    tpu.vector_store %arg8[%c0_22, %c0_23], %42 {strides = array<i32>} : memref<8x32xf32, #tpu.memory_space<vmem>>, vector<8x32xf32>,
    %c1_i32 = arith.constant 1 : i32
    %44 = arith.cmpi eq, %arg1, %c1_i32 : i32
    %45 = arith.extui %44 : i1 to i32
    %c0_i32_24 = arith.constant 0 : i32
    %46 = arith.cmpi ne, %45, %c0_i32_24 : i32
    scf.if %46 {
      %c0_25 = arith.constant 0 : index
      %c0_26 = arith.constant 0 : index
      %47 = vector.load %arg7[%c0_25, %c0_26] : memref<8x32xf32, #tpu.memory_space<vmem>>, vector<8x32xf32>
      tpu.vector_store %arg7[%c0_25, %c0_26], %42 {strides = array<i32>} : memref<8x32xf32, #tpu.memory_space<vmem>>, vector<8x32xf32>,
    } else {
    }
    return
  }
  func.func @transform_0(%arg0: i32, %arg1: i32) -> (i32, i32) {
    %c0_i32 = arith.constant 0 : i32
    %c0_i32_0 = arith.constant 0 : i32
    return %arg0, %c0_i32 : i32, i32
  }
  func.func @transform_1(%arg0: i32, %arg1: i32) -> (i32, i32, i32) {
    %c0_i32 = arith.constant 0 : i32
    %c0_i32_0 = arith.constant 0 : i32
    %c0_i32_1 = arith.constant 0 : i32
    return %arg1, %c0_i32, %c0_i32_0 : i32, i32, i32
  }
  func.func @transform_2(%arg0: i32, %arg1: i32) -> (i32, i32, i32) {
    %c0_i32 = arith.constant 0 : i32
    %c0_i32_0 = arith.constant 0 : i32
    %c0_i32_1 = arith.constant 0 : i32
    return %arg1, %c0_i32, %c0_i32_0 : i32, i32, i32
  }
  func.func @transform_3(%arg0: i32, %arg1: i32) -> (i32, i32, i32) {
    %c0_i32 = arith.constant 0 : i32
    %c0_i32_0 = arith.constant 0 : i32
    %c0_i32_1 = arith.constant 0 : i32
    return %arg1, %c0_i32, %c0_i32_0 : i32, i32, i32
  }
  func.func @transform_4(%arg0: i32, %arg1: i32) -> (i32, i32, i32) {
    %c0_i32 = arith.constant 0 : i32
    %c0_i32_0 = arith.constant 0 : i32
    %c0_i32_1 = arith.constant 0 : i32
    return %arg1, %c0_i32, %c0_i32_0 : i32, i32, i32
  }
  func.func @transform_5(%arg0: i32, %arg1: i32) -> (i32, i32) {
    %c0_i32 = arith.constant 0 : i32
    %c0_i32_0 = arith.constant 0 : i32
    return %arg0, %c0_i32 : i32, i32
  }
}

</mosaic_0001>

<llo_original>
// kernel: tpu_custom_call.1
$region0: #{tpu_custom_call.1}
  #allocation0 [shape = 'u32[]', space=smem, size = 0x4, offset = 0x4, fixed_abs, tag = 'smem constant byte address 0x4 - core index']
  #allocation1 [shape = 'u32[144,128]{1,0:T(1,128)}', space=vmem, size = 0x12000, scoped, tag = 'internal scratch']
  #allocation2 [shape = 'f32[8,32]{1,0:T(8,128)}', space=vmem, size = 0x1000, scoped, tag = 'scratch operand']
  %s0 = inlined_call_operand.vmem [shape: f32[16,32], index: 0, kind: input, shape index: {}]
  %s1 = inlined_call_operand.vmem [shape: bf16[2,32,128], index: 1, kind: input, shape index: {}]
  %s2 = inlined_call_operand.vmem [shape: bf16[2,128,32], index: 2, kind: input, shape index: {}]
  %s3 = inlined_call_operand.vmem [shape: f32[2,1,32], index: 3, kind: input, shape index: {}]
  %s4 = inlined_call_operand.vmem [shape: f32[2,1,32], index: 4, kind: input, shape index: {}]
  %s5 = inlined_call_operand.hbm [shape: f32[16,32], index: 5, kind: output, shape index: {}]
  %s6 = sld [smem:[#allocation0]]
  $region61: #{tpu_custom_call.1} parent=0
    _
  %s8 = ssub.s32 1, %s6
  %s9 = scalar_select 0, %s8, %s6
  $region1: #{tpu_custom_call.1} parent=0
    #allocation3 [shape = 'u8[8192]{0}', space=vmem, size = 0x2000, scoped, tag = 'output window, operand 0']
    #allocation4 [shape = 's32[2]{0}', space=sflag, size = 0x8, scoped, tag = 'scoped memory for tpu_custom_call.1']
    %10 = vsyncpa [#allocation4], 0
    %s11 = scalar_lea.sflag [#allocation4], 1
    %12 = vsyncpa %s11, 0
    loop: start=0, step=1, limit=6
    $region2: #{tpu_custom_call.1} parent=1 // loop_pre_header
      _
    $region3: #{tpu_custom_call.1} parent=1 // loop_header
      %s14 = sphi 0, %s18
      %p15 = scmp.ge.s32.totalorder %s14, 6
      %s21 = sphi 0, %s33
      %s22 = sphi 0, %s29
      %s23 = sphi 0, %s21
      %s24 = sphi 0, %s22
      %s25 = sphi 0, %s23
      %s26 = sphi 0, %s24
      %s36 = sphi 0, %s38
      %s39 = sphi 0, %s36
      %s40 = sphi 0, %s39
      %s56 = sphi 0, %s40
      %s62 = sphi 0, %s64
      %s65 = sphi 0, %s62
      %s66 = sphi 0, %s65
      %s82 = sphi 0, %s66
      %s88 = sphi 0, %s90
      %s91 = sphi 0, %s88
      %s92 = sphi 0, %s91
      %s108 = sphi 0, %s92
      %s114 = sphi 0, %s116
      %s117 = sphi 0, %s114
      %s118 = sphi 0, %s117
      %s134 = sphi 0, %s118
      %s140 = sphi 0, %s142
      %s143 = sphi 0, %s140
      %s144 = sphi 0, %s143
      %s160 = sphi 0, %s144
      %s166 = sphi 0, %s168
      %s169 = sphi 0, %s166
      %s170 = sphi 0, %s169
      %s186 = sphi 0, %s170
    $region4: #{tpu_custom_call.1} parent=1 // loop_header_branch
      %17 = sbr.rel (%p15) target = $region8
    $region5: #{tpu_custom_call.1} parent=1 // loop_body
      %s19 = ssub.s32 %s14, 1
      %s20 = ssub.s32 %s14, 2
      %s27 = sadd.s32 1, %s22
      %p28 = scmp.ge.s32.totalorder %s27, 2
      %s29 = scalar_select %p28, 0, %s27
      %s30 = sadd.s32 1, %s21
      %s31 = scalar_select %p28, %s30, %s21
      %p32 = scmp.ge.s32.totalorder %s31, 2
      %s33 = scalar_select %p32, 0, %s31
      %s34 = ssub.s32 %s21, %s33
      %p35 = scmp.eq.s32.totalorder %s34, 0
      %s37 = sadd.s32 %s36, 1
      %s38 = scalar_select %p35, %s36, %s37
      %p41 = pneg %p35
      %p42 = scmp.eq.s32.totalorder %s14, 3
      %p43 = por %p41, %p42
      %p44 = scmp.ne.s32.totalorder %s36, %s39
      %p45 = scmp.eq.s32.totalorder %s14, 0
      %p46 = por %p44, %p45
      %p47 = scmp.ne.s32.totalorder %s36, %s39
      %p48 = scmp.eq.s32.totalorder %s19, 3
      %p49 = por %p47, %p48
      %p50 = scmp.ne.s32.totalorder %s39, %s40
      %p51 = scmp.eq.s32.totalorder %s19, 0
      %p52 = por %p50, %p51
      %p53 = scmp.ne.s32.totalorder %s39, %s40
      %p54 = scmp.eq.s32.totalorder %s20, 3
      %p55 = por %p53, %p54
      %p57 = scmp.ne.s32.totalorder %s40, %s56
      %p58 = scmp.eq.s32.totalorder %s20, 0
      %p59 = por %p57, %p58
      %s60 = ssub.s32 %s22, %s29
      %p61 = scmp.eq.s32.totalorder %s60, 0
      %s63 = sadd.s32 %s62, 1
      %s64 = scalar_select %p61, %s62, %s63
      %p67 = pneg %p61
      %p68 = scmp.eq.s32.totalorder %s14, 3
      %p69 = por %p67, %p68
      %p70 = scmp.ne.s32.totalorder %s62, %s65
      %p71 = scmp.eq.s32.totalorder %s14, 0
      %p72 = por %p70, %p71
      %p73 = scmp.ne.s32.totalorder %s62, %s65
      %p74 = scmp.eq.s32.totalorder %s19, 3
      %p75 = por %p73, %p74
      %p76 = scmp.ne.s32.totalorder %s65, %s66
      %p77 = scmp.eq.s32.totalorder %s19, 0
      %p78 = por %p76, %p77
      %p79 = scmp.ne.s32.totalorder %s65, %s66
      %p80 = scmp.eq.s32.totalorder %s20, 3
      %p81 = por %p79, %p80
      %p83 = scmp.ne.s32.totalorder %s66, %s82
      %p84 = scmp.eq.s32.totalorder %s20, 0
      %p85 = por %p83, %p84
      %s86 = ssub.s32 %s22, %s29
      %p87 = scmp.eq.s32.totalorder %s86, 0
      %s89 = sadd.s32 %s88, 1
      %s90 = scalar_select %p87, %s88, %s89
      %p93 = pneg %p87
      %p94 = scmp.eq.s32.totalorder %s14, 3
      %p95 = por %p93, %p94
      %p96 = scmp.ne.s32.totalorder %s88, %s91
      %p97 = scmp.eq.s32.totalorder %s14, 0
      %p98 = por %p96, %p97
      %p99 = scmp.ne.s32.totalorder %s88, %s91
      %p100 = scmp.eq.s32.totalorder %s19, 3
      %p101 = por %p99, %p100
      %p102 = scmp.ne.s32.totalorder %s91, %s92
      %p103 = scmp.eq.s32.totalorder %s19, 0
      %p104 = por %p102, %p103
      %p105 = scmp.ne.s32.totalorder %s91, %s92
      %p106 = scmp.eq.s32.totalorder %s20, 3
      %p107 = por %p105, %p106
      %p109 = scmp.ne.s32.totalorder %s92, %s108
      %p110 = scmp.eq.s32.totalorder %s20, 0
      %p111 = por %p109, %p110
      %s112 = ssub.s32 %s22, %s29
      %p113 = scmp.eq.s32.totalorder %s112, 0
      %s115 = sadd.s32 %s114, 1
      %s116 = scalar_select %p113, %s114, %s115
      %p119 = pneg %p113
      %p120 = scmp.eq.s32.totalorder %s14, 3
      %p121 = por %p119, %p120
      %p122 = scmp.ne.s32.totalorder %s114, %s117
      %p123 = scmp.eq.s32.totalorder %s14, 0
      %p124 = por %p122, %p123
      %p125 = scmp.ne.s32.totalorder %s114, %s117
      %p126 = scmp.eq.s32.totalorder %s19, 3
      %p127 = por %p125, %p126
      %p128 = scmp.ne.s32.totalorder %s117, %s118
      %p129 = scmp.eq.s32.totalorder %s19, 0
      %p130 = por %p128, %p129
      %p131 = scmp.ne.s32.totalorder %s117, %s118
      %p132 = scmp.eq.s32.totalorder %s20, 3
      %p133 = por %p131, %p132
      %p135 = scmp.ne.s32.totalorder %s118, %s134
      %p136 = scmp.eq.s32.totalorder %s20, 0
      %p137 = por %p135, %p136
      %s138 = ssub.s32 %s22, %s29
      %p139 = scmp.eq.s32.totalorder %s138, 0
      %s141 = sadd.s32 %s140, 1
      %s142 = scalar_select %p139, %s140, %s141
      %p145 = pneg %p139
      %p146 = scmp.eq.s32.totalorder %s14, 3
      %p147 = por %p145, %p146
      %p148 = scmp.ne.s32.totalorder %s140, %s143
      %p149 = scmp.eq.s32.totalorder %s14, 0
      %p150 = por %p148, %p149
      %p151 = scmp.ne.s32.totalorder %s140, %s143
      %p152 = scmp.eq.s32.totalorder %s19, 3
      %p153 = por %p151, %p152
      %p154 = scmp.ne.s32.totalorder %s143, %s144
      %p155 = scmp.eq.s32.totalorder %s19, 0
      %p156 = por %p154, %p155
      %p157 = scmp.ne.s32.totalorder %s143, %s144
      %p158 = scmp.eq.s32.totalorder %s20, 3
      %p159 = por %p157, %p158
      %p161 = scmp.ne.s32.totalorder %s144, %s160
      %p162 = scmp.eq.s32.totalorder %s20, 0
      %p163 = por %p161, %p162
      %s164 = ssub.s32 %s21, %s33
      %p165 = scmp.eq.s32.totalorder %s164, 0
      %s167 = sadd.s32 %s166, 1
      %s168 = scalar_select %p165, %s166, %s167
      %p171 = pneg %p165
      %p172 = scmp.eq.s32.totalorder %s14, 3
      %p173 = por %p171, %p172
      %p174 = scmp.ne.s32.totalorder %s166, %s169
      %p175 = scmp.eq.s32.totalorder %s14, 0
      %p176 = por %p174, %p175
      %p177 = scmp.ne.s32.totalorder %s166, %s169
      %p178 = scmp.eq.s32.totalorder %s19, 3
      %p179 = por %p177, %p178
      %p180 = scmp.ne.s32.totalorder %s169, %s170
      %p181 = scmp.eq.s32.totalorder %s19, 0
      %p182 = por %p180, %p181
      %p183 = scmp.ne.s32.totalorder %s169, %s170
      %p184 = scmp.eq.s32.totalorder %s20, 3
      %p185 = por %p183, %p184
      %p187 = scmp.ne.s32.totalorder %s170, %s186
      %p188 = scmp.eq.s32.totalorder %s20, 0
      %p189 = por %p187, %p188
      %p190 = scmp.le.s32.totalorder 1, %s14
      %p191 = scmp.lt.s32.totalorder %s14, 5
      %p192 = pnand %p190, %p191
      %p193 = pneg %p192
      // Predicated region
      $region9: #{tpu_custom_call.1} parent=5 // pred_check
        _
      $region10: #{tpu_custom_call.1} parent=5 // pred_check_branch
        %195 = sbr.rel (%p192) target = $region12
      $region11: #{tpu_custom_call.1} parent=5 // pred_region
        %s196 = ssub.s32 %s14, 1
      $region12: #{tpu_custom_call.1} parent=5 // pred_fallthru
        _
      %p197 = scmp.lt.s32.totalorder %s14, 4
      // Predicated region
      $region13: #{tpu_custom_call.1} parent=5 // pred_check
        %p198 = pneg %p197
      $region14: #{tpu_custom_call.1} parent=5 // pred_check_branch
        %200 = sbr.rel (%p198) target = $region16
      $region15: #{tpu_custom_call.1} parent=5 // pred_region
        // Predicated region
        $region17: #{tpu_custom_call.1} parent=15 // pred_check
          %p201 = pneg %p46
        $region18: #{tpu_custom_call.1} parent=15 // pred_check_branch
          %203 = sbr.rel (%p201) target = $region20
        $region19: #{tpu_custom_call.1} parent=15 // pred_region
          %p204 = scmp.lt.s32.totalorder %s21, 1
          %s205 = scalar_select %p204, %s21, 1
          %s206 = smul.addr %s205, 8
          %s207 = scalar_lea.vmem %s0, %s206
        $region20: #{tpu_custom_call.1} parent=15 // pred_fallthru
          _
        // Predicated region
        $region21: #{tpu_custom_call.1} parent=15 // pred_check
          %p208 = pneg %p72
        $region22: #{tpu_custom_call.1} parent=15 // pred_check_branch
          %210 = sbr.rel (%p208) target = $region24
        $region23: #{tpu_custom_call.1} parent=15 // pred_region
          %p211 = scmp.lt.s32.totalorder %s22, 1
          %s212 = scalar_select %p211, %s22, 1
          %s213 = smul.addr %s212, 4
          %s214 = smul.addr %s213, 4
          %s215 = scalar_lea.vmem %s1, %s214
        $region24: #{tpu_custom_call.1} parent=15 // pred_fallthru
          _
        // Predicated region
        $region25: #{tpu_custom_call.1} parent=15 // pred_check
          %p216 = pneg %p98
        $region26: #{tpu_custom_call.1} parent=15 // pred_check_branch
          %218 = sbr.rel (%p216) target = $region28
        $region27: #{tpu_custom_call.1} parent=15 // pred_region
          %p219 = scmp.lt.s32.totalorder %s22, 1
          %s220 = scalar_select %p219, %s22, 1
          %s221 = smul.addr %s220, 16
          %s222 = smul.addr %s221, 4
          %s223 = scalar_lea.vmem %s2, %s222
        $region28: #{tpu_custom_call.1} parent=15 // pred_fallthru
          _
        // Predicated region
        $region29: #{tpu_custom_call.1} parent=15 // pred_check
          %p224 = pneg %p124
        $region30: #{tpu_custom_call.1} parent=15 // pred_check_branch
          %226 = sbr.rel (%p224) target = $region32
        $region31: #{tpu_custom_call.1} parent=15 // pred_region
          %p227 = scmp.lt.s32.totalorder %s22, 1
          %s228 = scalar_select %p227, %s22, 1
          %s229 = scalar_lea.vmem %s3, %s228
        $region32: #{tpu_custom_call.1} parent=15 // pred_fallthru
          _
        // Predicated region
        $region33: #{tpu_custom_call.1} parent=15 // pred_check
          %p230 = pneg %p150
        $region34: #{tpu_custom_call.1} parent=15 // pred_check_branch
          %232 = sbr.rel (%p230) target = $region36
        $region35: #{tpu_custom_call.1} parent=15 // pred_region
          %p233 = scmp.lt.s32.totalorder %s22, 1
          %s234 = scalar_select %p233, %s22, 1
          %s235 = scalar_lea.vmem %s4, %s234
        $region36: #{tpu_custom_call.1} parent=15 // pred_fallthru
          _
      $region16: #{tpu_custom_call.1} parent=5 // pred_fallthru
        _
      %p236 = scmp.le.s32.totalorder 1, %s14
      %p237 = scmp.lt.s32.totalorder %s14, 5
      %p238 = pnand %p236, %p237
      %p239 = pneg %p238
      // Predicated region
      $region37: #{tpu_custom_call.1} parent=5 // pred_check
        _
      $region38: #{tpu_custom_call.1} parent=5 // pred_check_branch
        %241 = sbr.rel (%p238) target = $region40
      $region39: #{tpu_custom_call.1} parent=5 // pred_region
        %s242 = ssub.s32 %s14, 1
        %p243 = scmp.lt.s32.totalorder %s23, 1
        %s244 = scalar_select %p243, %s23, 1
        %s245 = smul.addr %s244, 8
        %s246 = scalar_lea.vmem %s0, %s245
        %p247 = pneg %p52
        %p248 = pneg %p49
        %p249 = scmp.lt.s32.totalorder %s24, 1
        %s250 = scalar_select %p249, %s24, 1
        %s251 = smul.addr %s250, 4
        %s252 = smul.addr %s251, 4
        %s253 = scalar_lea.vmem %s1, %s252
        %p254 = pneg %p78
        %p255 = pneg %p75
        %p256 = scmp.lt.s32.totalorder %s24, 1
        %s257 = scalar_select %p256, %s24, 1
        %s258 = smul.addr %s257, 16
        %s259 = smul.addr %s258, 4
        %s260 = scalar_lea.vmem %s2, %s259
        %p261 = pneg %p104
        %p262 = pneg %p101
        %p263 = scmp.lt.s32.totalorder %s24, 1
        %s264 = scalar_select %p263, %s24, 1
        %s265 = scalar_lea.vmem %s3, %s264
        %p266 = pneg %p130
        %p267 = pneg %p127
        %p268 = scmp.lt.s32.totalorder %s24, 1
        %s269 = scalar_select %p268, %s24, 1
        %s270 = scalar_lea.vmem %s4, %s269
        %p271 = pneg %p156
        %p272 = pneg %p153
        %p273 = pneg %p182
        %p274 = pneg %p179
        %s275 = sand.u32 %s169, 1
        %s276 = scalar_lea.sflag [#allocation4], %s275
        %s277 = sand.u32 %s169, 1
        %s278 = smul.addr %s277, 8
        %s279 = scalar_lea.vmem [#allocation3], %s278
        %p280 = scmp.lt.s32.totalorder %s23, 1
        %s281 = scalar_select %p280, %s23, 1
        %s282 = smul.addr %s281, 8
        %s283 = scalar_lea.vmem %s0, %s282
        %p284 = scmp.lt.s32.totalorder %s24, 1
        %s285 = scalar_select %p284, %s24, 1
        %s286 = smul.addr %s285, 4
        %s287 = smul.addr %s286, 4
        %s288 = scalar_lea.vmem %s1, %s287
        %p289 = scmp.lt.s32.totalorder %s24, 1
        %s290 = scalar_select %p289, %s24, 1
        %s291 = smul.addr %s290, 16
        %s292 = smul.addr %s291, 4
        %s293 = scalar_lea.vmem %s2, %s292
        %p294 = scmp.lt.s32.totalorder %s24, 1
        %s295 = scalar_select %p294, %s24, 1
        %s296 = scalar_lea.vmem %s3, %s295
        %p297 = scmp.lt.s32.totalorder %s24, 1
        %s298 = scalar_select %p297, %s24, 1
        %s299 = scalar_lea.vmem %s4, %s298
        %p301 = scmp.eq.s32.totalorder %s24, 0
        // Predicated region
        $region41: #{tpu_custom_call.1} parent=39 // pred_check
          %p302 = pneg %p301
        $region42: #{tpu_custom_call.1} parent=39 // pred_check_branch
          %304 = sbr.rel (%p302) target = $region44
        $region43: #{tpu_custom_call.1} parent=39 // pred_region
          %v305 = vld [vmem:[%s283] sm:$0xff]
          %vm306 = vcmask 261120
          %307 = vst.msk [vmem:[#allocation2] sm:$0xff] %vm306, %v305
        $region44: #{tpu_custom_call.1} parent=39 // pred_fallthru
          _
        %v308 = vld [vmem:[#allocation2] sm:$0xff]
        %v309 = vpack.c.bf16 %v308, %v308
        %v310 = vld [vmem:[%s288] sm:$0xf]
        %v311 = vld [vmem:[%s288 + $0x4] sm:$0xf]
        %v312 = vld [vmem:[%s288 + $0x8] sm:$0xf]
        %v313 = vld [vmem:[%s288 + $0xc] sm:$0xf]
        %v318 = vunpack.c.l.b16 %v310
        %v319 = vunpack.c.l.b16 %v311
        %v320 = vunpack.c.l.b16 %v312
        %v321 = vunpack.c.l.b16 %v313
        %v322 = vpack.c.b16 %v319, %v318
        %v323 = vpack.c.b16 %v321, %v320
        %vm326 = vcmask 261120
        %v328 = vsel %vm326, %v309, 0
        %330 = vmatprep.subr.bf16.mxu0 0
        %331 = vmatpush1.bf16.msra.mxu0 0
        %332 = vmatprep.subr.bf16.mxu0 0
        %333 = vmatpush1.bf16.msra.mxu0 0
        %334 = vmatprep.subr.bf16.mxu0 0
        %335 = vmatpush1.bf16.msra.mxu0 0
        %336 = vmatprep.subr.bf16.mxu0 0
        %337 = vmatpush1.bf16.msra.mxu0 0
        %338 = vmatprep.subr.bf16.mxu0 0
        %339 = vmatpush1.bf16.msra.mxu0 0
        %340 = vmatprep.subr.bf16.mxu0 0
        %341 = vmatpush1.bf16.msra.mxu0 0
        %342 = vmatprep.subr.bf16.mxu0 0
        %343 = vmatpush1.bf16.msra.mxu0 %v323
        %344 = vmatprep.subr.bf16.mxu0 0
        %345 = vmatpush1.bf16.msra.mxu0 %v322
        %346 = vmatprep.subr.bf16.mxu0 0
        %347 = vmatpush2.bf16.msra.mxu0 0
        %348 = vmatprep.subr.bf16.mxu0 0
        %349 = vmatpush2.bf16.msra.mxu0 0
        %350 = vmatprep.subr.bf16.mxu0 0
        %351 = vmatpush2.bf16.msra.mxu0 0
        %352 = vmatprep.subr.bf16.mxu0 0
        %353 = vmatpush2.bf16.msra.mxu0 0
        %354 = vmatprep.subr.bf16.mxu0 0
        %355 = vmatpush2.bf16.msra.mxu0 0
        %356 = vmatprep.subr.bf16.mxu0 0
        %357 = vmatpush2.bf16.msra.mxu0 0
        %358 = vmatprep.subr.bf16.mxu0 0
        %359 = vmatpush2.bf16.msra.mxu0 0
        %360 = vmatprep.subr.bf16.mxu0 0
        %361 = vmatpush2.bf16.msra.mxu0 0
        %362 = vmatprep.mubr.bf16.mxu0 0
        %363 = vmatmul.mubr.bf16.gmra.mxu0 %v328
        %v364 = vpop.f32.mrf.mxu0
        %v365 = vadd.f32 0.0, %v364
        %v366 = vpop.f32.mrf.mxu0
        %v367 = vpop.f32.mrf.mxu0
        %v368 = vpop.f32.mrf.mxu0
        %369 = vdwg.mxu0
        %v370 = vmax.f32 %v365, 0.0
        %v371 = vpack.c.bf16 %v370, %v370
        %v372 = vld [vmem:[%s293] sm:$0xf]
        %v373 = vld [vmem:[%s293 + $0x4] sm:$0xf]
        %v374 = vld [vmem:[%s293 + $0x8] sm:$0xf]
        %v375 = vld [vmem:[%s293 + $0xc] sm:$0xf]
        %v376 = vld [vmem:[%s293 + $0x10] sm:$0xf]
        %v377 = vld [vmem:[%s293 + $0x14] sm:$0xf]
        %v378 = vld [vmem:[%s293 + $0x18] sm:$0xf]
        %v379 = vld [vmem:[%s293 + $0x1c] sm:$0xf]
        %v380 = vld [vmem:[%s293 + $0x20] sm:$0xf]
        %v381 = vld [vmem:[%s293 + $0x24] sm:$0xf]
        %v382 = vld [vmem:[%s293 + $0x28] sm:$0xf]
        %v383 = vld [vmem:[%s293 + $0x2c] sm:$0xf]
        %v384 = vld [vmem:[%s293 + $0x30] sm:$0xf]
        %v385 = vld [vmem:[%s293 + $0x34] sm:$0xf]
        %v386 = vld [vmem:[%s293 + $0x38] sm:$0xf]
        %v387 = vld [vmem:[%s293 + $0x3c] sm:$0xf]
        %v404 = vunpack.c.l.b16 %v372
        %v405 = vunpack.c.l.b16 %v373
        %v406 = vunpack.c.l.b16 %v374
        %v407 = vunpack.c.l.b16 %v375
        %v408 = vunpack.c.l.b16 %v376
        %v409 = vunpack.c.l.b16 %v377
        %v410 = vunpack.c.l.b16 %v378
        %v411 = vunpack.c.l.b16 %v379
        %v412 = vunpack.c.l.b16 %v380
        %v413 = vunpack.c.l.b16 %v381
        %v414 = vunpack.c.l.b16 %v382
        %v415 = vunpack.c.l.b16 %v383
        %v416 = vunpack.c.l.b16 %v384
        %v417 = vunpack.c.l.b16 %v385
        %v418 = vunpack.c.l.b16 %v386
        %v419 = vunpack.c.l.b16 %v387
        %v420 = vpack.c.b16 %v405, %v404
        %v421 = vpack.c.b16 %v407, %v406
        %v422 = vpack.c.b16 %v409, %v408
        %v423 = vpack.c.b16 %v411, %v410
        %v424 = vpack.c.b16 %v413, %v412
        %v425 = vpack.c.b16 %v415, %v414
        %v426 = vpack.c.b16 %v417, %v416
        %v427 = vpack.c.b16 %v419, %v418
        %436 = vmatprep.subr.bf16.mxu0 0
        %437 = vmatpush1.bf16.msra.mxu0 %v427
        %438 = vmatprep.subr.bf16.mxu0 0
        %439 = vmatpush1.bf16.msra.mxu0 %v426
        %440 = vmatprep.subr.bf16.mxu0 0
        %441 = vmatpush1.bf16.msra.mxu0 %v425
        %442 = vmatprep.subr.bf16.mxu0 0
        %443 = vmatpush1.bf16.msra.mxu0 %v424
        %444 = vmatprep.subr.bf16.mxu0 0
        %445 = vmatpush1.bf16.msra.mxu0 %v423
        %446 = vmatprep.subr.bf16.mxu0 0
        %447 = vmatpush1.bf16.msra.mxu0 %v422
        %448 = vmatprep.subr.bf16.mxu0 0
        %449 = vmatpush1.bf16.msra.mxu0 %v421
        %450 = vmatprep.subr.bf16.mxu0 0
        %451 = vmatpush1.bf16.msra.mxu0 %v420
        %452 = vmatprep.subr.bf16.mxu0 0
        %453 = vmatpush2.bf16.msra.mxu0 0
        %454 = vmatprep.subr.bf16.mxu0 0
        %455 = vmatpush2.bf16.msra.mxu0 0
        %456 = vmatprep.subr.bf16.mxu0 0
        %457 = vmatpush2.bf16.msra.mxu0 0
        %458 = vmatprep.subr.bf16.mxu0 0
        %459 = vmatpush2.bf16.msra.mxu0 0
        %460 = vmatprep.subr.bf16.mxu0 0
        %461 = vmatpush2.bf16.msra.mxu0 0
        %462 = vmatprep.subr.bf16.mxu0 0
        %463 = vmatpush2.bf16.msra.mxu0 0
        %464 = vmatprep.subr.bf16.mxu0 0
        %465 = vmatpush2.bf16.msra.mxu0 0
        %466 = vmatprep.subr.bf16.mxu0 0
        %467 = vmatpush2.bf16.msra.mxu0 0
        %468 = vmatprep.mubr.bf16.mxu0 0
        %469 = vmatmul.mubr.bf16.gmra.mxu0 %v371
        %v470 = vpop.f32.mrf.mxu0
        %v471 = vadd.f32 0.0, %v470
        %v472 = vpop.f32.mrf.mxu0
        %v473 = vpop.f32.mrf.mxu0
        %v474 = vpop.f32.mrf.mxu0
        %475 = vdwg.mxu0
        %v476 = vadd.f32 %v308, %v471
        %v477 = vld [vmem:[%s296] sm:$0x1]
        %v478 = vld [vmem:[%s299] sm:$0x1]
        %v479 = vsel %vm326, %v476, 0.0
        %480 = vadd.xlane.f32.xlu0 %v479
        %v481 = vpop.xlane.xlu0 %480
        %v482 = vmul.f32 %v481, 0.03125
        %v483 = vmul.f32 %v476, %v476
        %v484 = vsel %vm326, %v483, 0.0
        %485 = vadd.xlane.f32.xlu0 %v484
        %v486 = vpop.xlane.xlu0 %485
        %v487 = vmul.f32 %v486, 0.03125
        %v488 = vmul.f32 %v482, %v482
        %v489 = vsub.f32 %v487, %v488
        %v490 = vmax.f32 %v489, 0.0
        %v491 = vsub.f32 %v476, %v482
        %v492 = vadd.f32 %v490, 1e-05
        %v493 = vrsqrt.pop %v492
        %v494 = vmul.f32 %v491, %v493
        %v496 = vlaneseq
        %v497 = vshrl.u32 %v496, 7
        %v498 = vsub.s32 0, %v497
        %v499 = vrot.slane %v477, %v498
        %v501 = vmul.f32 %v494, %v499
        %v503 = vlaneseq
        %v504 = vshrl.u32 %v503, 7
        %v505 = vsub.s32 0, %v504
        %v506 = vrot.slane %v478, %v505
        %v508 = vadd.f32 %v501, %v506
        %509 = vst.msk [vmem:[#allocation2] sm:$0xff] %vm326, %v508
        %p510 = scmp.eq.s32.totalorder %s24, 1
        // Predicated region
        $region45: #{tpu_custom_call.1} parent=39 // pred_check
          %p511 = pneg %p510
        $region46: #{tpu_custom_call.1} parent=39 // pred_check_branch
          %513 = sbr.rel (%p511) target = $region48
        $region47: #{tpu_custom_call.1} parent=39 // pred_region
          %514 = vst.msk [vmem:[%s279] sm:$0xff] %vm326, %v508
        $region48: #{tpu_custom_call.1} parent=39 // pred_fallthru
          _
        %s515 = sand.u32 %s169, 1
        %s516 = scalar_lea.sflag [#allocation4], %s515
        %s517 = sand.u32 %s169, 1
        %s518 = smul.addr %s517, 8
        %s519 = scalar_lea.vmem [#allocation3], %s518
        // Predicated region
        $region49: #{tpu_custom_call.1} parent=39 // pred_check
          %p520 = pneg %p179
        $region50: #{tpu_custom_call.1} parent=39 // pred_check_branch
          %522 = sbr.rel (%p520) target = $region52
        $region51: #{tpu_custom_call.1} parent=39 // pred_region
          %s524 = ssub.s32 128, 128
          %525 = vsyncadd %s516, %s524
          %s526 = smul.addr %s23, 128
          %s527 = scalar_lea.hbm %s5, %s526
          %s529 = sshll.u32 %s519, 4
          %s530 = int_to_ptr.vmem [resolvable:$true] %s529
          %532 = dma.vmem_to_hbm [thread:$0]  %s530, 128, %s527, %s516
        $region52: #{tpu_custom_call.1} parent=39 // pred_fallthru
          _
      $region40: #{tpu_custom_call.1} parent=5 // pred_fallthru
        _
      %p533 = scmp.le.s32.totalorder 2, %s14
      // Predicated region
      $region53: #{tpu_custom_call.1} parent=5 // pred_check
        %p534 = pneg %p533
      $region54: #{tpu_custom_call.1} parent=5 // pred_check_branch
        %536 = sbr.rel (%p534) target = $region56
      $region55: #{tpu_custom_call.1} parent=5 // pred_region
        %s537 = ssub.s32 %s14, 2
        // Predicated region
        $region57: #{tpu_custom_call.1} parent=55 // pred_check
          %p538 = pneg %p185
        $region58: #{tpu_custom_call.1} parent=55 // pred_check_branch
          %540 = sbr.rel (%p538) target = $region60
        $region59: #{tpu_custom_call.1} parent=55 // pred_region
          %s541 = sand.u32 %s170, 1
          %s542 = scalar_lea.sflag [#allocation4], %s541
          %s543 = sand.u32 %s170, 1
          %s544 = smul.addr %s543, 8
          %s545 = scalar_lea.vmem [#allocation3], %s544
          %546 = dma.done %s542, 128
        $region60: #{tpu_custom_call.1} parent=55 // pred_fallthru
          _
      $region56: #{tpu_custom_call.1} parent=5 // pred_fallthru
        _
    $region6: #{tpu_custom_call.1} parent=1 // loop_footer
      %s18 = sadd.s32 1, %s14
    $region7: #{tpu_custom_call.1} parent=1 // loop_footer_branch
      %13 = sbr.rel target = $region3
    $region8: #{tpu_custom_call.1} parent=1 // loop_exit
      _
    %547 = vsyncpa [#allocation4], 1
    %s548 = scalar_lea.sflag [#allocation4], 1
    %549 = vsyncpa %s548, 1

</llo_original>
